<compile_context>
chip_gen: v6e
topology: v6e:2x2x1
jax: 0.10.0
libtpu: 0.0.40
codegen_flags: <defaults>
</compile_context>

<pallas_src>
import functools

import jax
import jax.numpy as jnp
from jax.experimental import pallas as pl
from jax.experimental.pallas import tpu as pltpu


def _clamp_kernel(x_ref, o_ref, *, min_val, max_val):
    # Whole tile in, whole tile out; pure VPU work (one min + one max per vreg).
    o_ref[...] = jnp.clip(x_ref[...], min_val, max_val)


def pallas_clamp(x, min_val=0.0, max_val=1.0):
    """torch.clamp(x, min, max) as a Pallas TPU kernel.

    Works for any shape/size: the array is flattened, padded to a lane-dense
    (rows, LANE) layout (LANE multiple of 128), processed in large row blocks,
    then sliced back to the original shape.
    """
    orig_shape = x.shape
    orig_dtype = x.dtype
    flat = x.reshape(-1)
    n = flat.size

    # Lane-dense 2-D layout: last dim a multiple of 128 (512 when there is
    # enough data so each block stores several unmasked vregs per row group).
    LANE = 512 if n >= 8 * 512 else 128
    rows = -(-n // LANE)

    # Row block: full extent for small inputs, otherwise 512-row tiles
    # (512x512 f32 = 1 MiB per tile; in+out double-buffered ~4 MiB VMEM).
    if rows <= 1024:
        block_rows = rows            # full-extent block satisfies (8,128) rule
    else:
        block_rows = 512             # multiple of 8

    padded_rows = -(-rows // block_rows) * block_rows
    pad_amount = padded_rows * LANE - n
    if pad_amount:
        flat = jnp.pad(flat, (0, pad_amount))
    x2 = flat.reshape(padded_rows, LANE)

    grid = (padded_rows // block_rows,)

    itemsize = jnp.dtype(orig_dtype).itemsize
    cost = pl.CostEstimate(
        flops=2 * n,                       # one min + one max per element
        transcendentals=0,
        bytes_accessed=2 * n * itemsize,   # read + write
    )

    kernel = functools.partial(
        _clamp_kernel, min_val=float(min_val), max_val=float(max_val)
    )

    out = pl.pallas_call(
        kernel,
        out_shape=jax.ShapeDtypeStruct(x2.shape, x2.dtype),
        grid_spec=pltpu.PrefetchScalarGridSpec(
            num_scalar_prefetch=0,
            grid=grid,
            in_specs=[pl.BlockSpec((block_rows, LANE), lambda i: (i, 0))],
            out_specs=pl.BlockSpec((block_rows, LANE), lambda i: (i, 0)),
        ),
        compiler_params=pltpu.CompilerParams(
            dimension_semantics=("parallel",),
        ),
        cost_estimate=cost,
    )(x2)

    return out.reshape(-1)[:n].reshape(orig_shape).astype(orig_dtype)


class Clamp:
    """Mirror of the PyTorch module: Clamp(min=0, max=1)."""

    def __init__(self, min=0, max=1):
        self.min, self.max = (min, max)

    def __call__(self, x):
        return pallas_clamp(x, self.min, self.max)


@jax.jit
def clamp_forward(x):
    return pallas_clamp(x, 0.0, 1.0)


if __name__ == "__main__":
    key = jax.random.PRNGKey(0)
    # Small NCHW-like input consistent with the module's usage.
    x = 2.0 * jax.random.normal(key, (2, 4, 16, 16), jnp.float32)

    module = Clamp(min=0, max=1)
    out = module(x)
    out = jax.block_until_ready(out)

    ref = jnp.clip(x, 0.0, 1.0)
    assert out.shape == x.shape, out.shape
    assert out.dtype == x.dtype, out.dtype
    assert jnp.allclose(out, ref, atol=0.0, rtol=0.0), "mismatch vs reference"

    # Also exercise the jitted path once.
    out2 = jax.block_until_ready(clamp_forward(x))
    assert jnp.allclose(out2, ref), "mismatch vs reference (jit path)"

    print("KERNEL_OK")
</pallas_src>

<mosaic_0001>
module attributes {stable_mosaic.version = 11 : i64} {
  func.func @_clamp_kernel(%arg0: i32, %arg1: memref<16x128xf32, #tpu.memory_space<vmem>>, %arg2: memref<16x128xf32, #tpu.memory_space<vmem>>) attributes {dimension_semantics = [#tpu.dimension_semantics<parallel>], iteration_bounds = array<i64: 1>, scalar_prefetch = 0 : i64, scratch_operands = 0 : i64, tpu.core_type = #tpu.core_type<tc>, window_params = [{transform_indices = @transform_0, window_bounds = array<i64: 16, 128>}, {transform_indices = @transform_1, window_bounds = array<i64: 16, 128>}]} {
    %c0 = arith.constant 0 : index
    %c0_0 = arith.constant 0 : index
    %0 = vector.load %arg1[%c0, %c0_0] : memref<16x128xf32, #tpu.memory_space<vmem>>, vector<16x128xf32>
    %cst = arith.constant 0.000000e+00 : f32
    %cst_1 = arith.constant 1.000000e+00 : f32
    %1 = vector.broadcast %cst : f32 to vector<16x128xf32>
    %2 = arith.maximumf %1, %0 : vector<16x128xf32>
    %3 = vector.broadcast %cst_1 : f32 to vector<16x128xf32>
    %4 = arith.minimumf %3, %2 : vector<16x128xf32>
    %c0_2 = arith.constant 0 : index
    %c0_3 = arith.constant 0 : index
    %5 = vector.load %arg2[%c0_2, %c0_3] : memref<16x128xf32, #tpu.memory_space<vmem>>, vector<16x128xf32>
    tpu.vector_store %arg2[%c0_2, %c0_3], %4 {strides = array<i32>} : memref<16x128xf32, #tpu.memory_space<vmem>>, vector<16x128xf32>,
    return
  }
  func.func @transform_0(%arg0: i32) -> (i32, i32) {
    %c0_i32 = arith.constant 0 : i32
    %c0_i32_0 = arith.constant 0 : i32
    return %arg0, %c0_i32 : i32, i32
  }
  func.func @transform_1(%arg0: i32) -> (i32, i32) {
    %c0_i32 = arith.constant 0 : i32
    %c0_i32_0 = arith.constant 0 : i32
    return %arg0, %c0_i32 : i32, i32
  }
}

</mosaic_0001>

<llo_original>
// kernel: tpu_custom_call.1
$region0: #{tpu_custom_call.1}
  #allocation0 [shape = 'u32[]', space=smem, size = 0x4, offset = 0x4, fixed_abs, tag = 'smem constant byte address 0x4 - core index']
  #allocation1 [shape = 'u32[144,128]{1,0:T(1,128)}', space=vmem, size = 0x12000, scoped, tag = 'internal scratch']
  %s0 = inlined_call_operand.hbm [shape: f32[16,128], index: 0, kind: input, shape index: {}]
  %s1 = inlined_call_operand.hbm [shape: f32[16,128], index: 1, kind: output, shape index: {}]
  %s2 = sld [smem:[#allocation0]]
  $region18: #{tpu_custom_call.1} parent=0
    _
  %s4 = ssub.s32 1, %s2
  %s5 = scalar_select 0, %s4, %s2
  $region1: #{tpu_custom_call.1} parent=0
    #allocation2 [shape = 'u8[8192]{0}', space=vmem, size = 0x2000, scoped, tag = 'input window, operand 0, single buffered']
    #allocation3 [shape = 's32[1]{0}', space=sflag, size = 0x4, scoped, tag = 'scoped memory for tpu_custom_call.1']
    #allocation4 [shape = 's32[1]{0}', space=sflag, size = 0x4, scoped, tag = 'scoped memory for tpu_custom_call.1']
    #allocation5 [shape = 'u8[8192]{0}', space=vmem, size = 0x2000, scoped, tag = 'output window, operand 0, single buffered']
    %6 = vsyncpa [#allocation3], 0
    %7 = vsyncpa [#allocation4], 0
    // Predicated region
    $region2: #{tpu_custom_call.1} parent=1 // pred_check
      _
    $region3: #{tpu_custom_call.1} parent=1 // pred_check_branch
      %9 = sbr.rel (0) target = $region5
    $region4: #{tpu_custom_call.1} parent=1 // pred_region
      %s11 = ssub.s32 256, 256
      %12 = vsyncadd [#allocation3], %s11
      %s13 = sshll.u32 [#allocation2], 4
      %s14 = int_to_ptr.vmem [resolvable:$true] %s13
      %19 = dma.hbm_to_vmem [thread:$0]  %s0, 256, %s14, [#allocation3], 128, 128, 8
    $region5: #{tpu_custom_call.1} parent=1 // pred_fallthru
      _
    // Predicated region
    $region6: #{tpu_custom_call.1} parent=1 // pred_check
      _
    $region7: #{tpu_custom_call.1} parent=1 // pred_check_branch
      %21 = sbr.rel (0) target = $region9
    $region8: #{tpu_custom_call.1} parent=1 // pred_region
      %22 = dma.done [#allocation3], 256
    $region9: #{tpu_custom_call.1} parent=1 // pred_fallthru
      _
    %v23 = vld [vmem:[#allocation2] sm:$0xff]
    %v24 = vld [vmem:[#allocation2 + $0x8] sm:$0xff]
    %v25 = vmax.f32 %v23, 0.0
    %v26 = vmax.f32 %v24, 0.0
    %v27 = vmin.f32 %v25, 1.0
    %v28 = vmin.f32 %v26, 1.0
    %29 = vst [vmem:[#allocation5] sm:$0xff] %v27
    %30 = vst [vmem:[#allocation5 + $0x8] sm:$0xff] %v28
    // Predicated region
    $region10: #{tpu_custom_call.1} parent=1 // pred_check
      _
    $region11: #{tpu_custom_call.1} parent=1 // pred_check_branch
      %32 = sbr.rel (0) target = $region13
    $region12: #{tpu_custom_call.1} parent=1 // pred_region
      %s34 = ssub.s32 256, 256
      %35 = vsyncadd [#allocation4], %s34
      %s36 = sshll.u32 [#allocation5], 4
      %s37 = int_to_ptr.vmem [resolvable:$true] %s36
      %42 = dma.vmem_to_hbm [thread:$0]  %s37, 256, %s1, [#allocation4], 128, 128, 8
    $region13: #{tpu_custom_call.1} parent=1 // pred_fallthru
      _
    // Predicated region
    $region14: #{tpu_custom_call.1} parent=1 // pred_check
      _
    $region15: #{tpu_custom_call.1} parent=1 // pred_check_branch
      %44 = sbr.rel (0) target = $region17
    $region16: #{tpu_custom_call.1} parent=1 // pred_region
      %45 = dma.done [#allocation4], 256
    $region17: #{tpu_custom_call.1} parent=1 // pred_fallthru
      _
    %46 = vsyncpa [#allocation3], 1
    %47 = vsyncpa [#allocation4], 1

</llo_original>
